<compile_context>
chip_gen: v5e
topology: v5e:2x2
jax: 0.10.0
libtpu: 0.0.40
codegen_flags: <defaults>
</compile_context>

<pallas_src>
import functools

import jax
import jax.numpy as jnp
from jax.experimental import pallas as pl
from jax.experimental.pallas import tpu as pltpu


def _sigmoid(x):
    # Single-EUP-pass, overflow-free sigmoid (tanh form).
    return 0.5 * jnp.tanh(0.5 * x) + 0.5


# ----------------------------------------------------------------------------
# One-time capability probe: sublane pltpu.roll with jnp.roll semantics.
# ----------------------------------------------------------------------------
_XLU_ROLL_OK = None


def _xlu_roll_ok():
    global _XLU_ROLL_OK
    if _XLU_ROLL_OK is None:
        try:
            def _k(x_ref, o_ref):
                o_ref[...] = pltpu.roll(x_ref[...], 5, 0)

            x = jnp.arange(16 * 32, dtype=jnp.float32).reshape(16, 32)
            y = pl.pallas_call(
                _k, out_shape=jax.ShapeDtypeStruct((16, 32), jnp.float32))(x)
            _XLU_ROLL_OK = bool(jnp.array_equal(y, jnp.roll(x, 5, axis=0)))
        except Exception:
            _XLU_ROLL_OK = False
    return _XLU_ROLL_OK


# ----------------------------------------------------------------------------
# Kernel
# ----------------------------------------------------------------------------
def _qrnn_kernel(x_ref, w_ref, b_ref, o_ref, xprev_ref, carry_ref, *,
                 mode, k, Tt, H, Bb, use_xlu_roll, flat_out):
    """One (batch block, time chunk) grid step.

    x_ref     : (Bb, Tt, C)            unpadded input chunk (conv dtype)
    w_ref     : (k*C, G*H)             fused im2col gate weights (conv dtype)
    b_ref     : (1, G*H)               fused gate biases (float32)
    o_ref     : (Bb, Tt, H) / (Bb, Tt*H)  hidden-state output chunk
    xprev_ref : (Bb, max(k-1,1), C)    conv left-context carried across chunks
    carry_ref : (Bb, H)                recurrence carry (h at end of prev chunk)
    """
    C = x_ref.shape[-1]
    M = Bb * Tt
    t_chunk = pl.program_id(1)

    @pl.when(t_chunk == 0)
    def _init():
        xprev_ref[...] = jnp.zeros_like(xprev_ref)   # causal zero pad
        carry_ref[...] = jnp.zeros_like(carry_ref)   # h[-1] = 0

    x = x_ref[...]                                   # (Bb, Tt, C)
    if k > 1:
        xchunk = jnp.concatenate([xprev_ref[...], x], axis=1)  # (Bb, Tt+k-1, C)
        xprev_ref[...] = xchunk[:, Tt:, :]           # last k-1 steps for next chunk
    else:
        xchunk = x

    # Fused causal conv for all gates: ONE (M, k*C) x (k*C, G*H) MXU matmul,
    # f32 accumulate.
    xcat = jnp.concatenate([xchunk[:, j:j + Tt, :] for j in range(k)], axis=-1)
    raw = jnp.dot(xcat.reshape(M, k * C), w_ref[...],
                  preferred_element_type=jnp.float32) + b_ref[...]   # (M, G*H)

    # Gate nonlinearities, consumed slice-by-slice so `raw` dies before the scan.
    z = _sigmoid(raw[:, 0 * H:1 * H])
    f = _sigmoid(raw[:, 1 * H:2 * H])
    if mode == "ifo":
        g = _sigmoid(raw[:, 3 * H:4 * H])            # input gate i
    else:
        g = 1.0 - f                                  # sigmoid(-raw_f), no extra EUP pass
    if mode in ("fo", "ifo"):
        o_gate = _sigmoid(raw[:, 2 * H:3 * H])
    u = g * z

    # TODO(synk): zoneout (Bernoulli masking of f) is not implemented; only the
    # deterministic zoneout=0.0 path of the PyTorch module is supported.

    # In-chunk inclusive scan of the affine maps (f, u): Hillis-Steele with XLU
    # rolls; the (M, 1) local-time mask keeps batch rows independent (roll wraps
    # across rows, the mask replaces wrapped rows with the identity map).
    t_loc = jax.lax.broadcasted_iota(jnp.int32, (M, 1), 0) % Tt
    s = 1
    while s < Tt:
        if use_xlu_roll:
            f_sh = pltpu.roll(f, s, 0)
            u_sh = pltpu.roll(u, s, 0)
        else:
            f_sh = jnp.concatenate([f[M - s:, :], f[:M - s, :]], axis=0)
            u_sh = jnp.concatenate([u[M - s:, :], u[:M - s, :]], axis=0)
        valid = t_loc >= s
        u = f * jnp.where(valid, u_sh, 0.0) + u      # uses old f, then update f
        f = f * jnp.where(valid, f_sh, 1.0)
        s *= 2

    # Stitch to previous chunks: h[b, t] = F[b, t] * carry[b] + U[b, t].
    F3 = f.reshape(Bb, Tt, H)
    U3 = u.reshape(Bb, Tt, H)
    hidden = F3 * carry_ref[...][:, None, :] + U3    # pre-output-gate hidden
    carry_ref[...] = hidden[:, Tt - 1, :]

    if mode in ("fo", "ifo"):
        hidden = hidden * o_gate.reshape(Bb, Tt, H)

    if flat_out:
        o_ref[...] = hidden.reshape(Bb, Tt * H).astype(o_ref.dtype)
    else:
        o_ref[...] = hidden.astype(o_ref.dtype)


# ----------------------------------------------------------------------------
# Wrapper
# ----------------------------------------------------------------------------
def _vmem_capacity_bytes():
    try:
        return int(pltpu.get_tpu_info().vmem_capacity_bytes)
    except Exception:
        return 64 * 1024 * 1024      # conservative: v7x per-TC VMEM


def _step_vmem_bytes(Bb, Tt, C, H, GH, k, conv_bytes, out_bytes):
    """Rough per-grid-step VMEM footprint (pipelined blocks + temporaries)."""
    M = Bb * Tt
    return int(
        2 * Bb * Tt * C * conv_bytes           # double-buffered input block
        + 2 * Bb * Tt * H * out_bytes          # double-buffered output block
        + k * C * GH * conv_bytes + 4 * GH     # resident fused weights + bias
        + Bb * max(k - 1, 1) * C * conv_bytes  # conv-context scratch
        + 4 * Bb * H                           # recurrence carry scratch
        + M * k * C * conv_bytes               # im2col slab
        + 4 * M * GH                           # fused gate logits (f32)
        + 4 * 8 * M * H                        # gates + scan temporaries (f32)
    )


def _choose_time_block(T, requested=None, max_tt=256):
    if requested is not None:
        assert T % requested == 0 and (requested % 8 == 0 or requested == T)
        return requested
    cands = [d for d in range(1, T + 1)
             if T % d == 0 and (d == T or d % 8 == 0)]
    small = [d for d in cands if d <= max_tt]
    return max(small) if small else min(cands)


def qrnn_forward(x, gate_weights, gate_biases, *, kernel_size, mode="f",
                 batch_block=8, time_block=None,
                 conv_dtype=jnp.bfloat16, out_dtype=jnp.float32):
    """Pallas QRNNLayer forward.

    x            : (B, T, C) float32
    gate_weights : per-gate Conv1d weights, each (H, C, k); order z, f, [o], [i]
    gate_biases  : per-gate Conv1d biases, each (H,)
    """
    x = x.astype(jnp.float32)
    B, T, C = x.shape
    k = kernel_size
    G = {"f": 2, "fo": 3, "ifo": 4}[mode]
    assert len(gate_weights) == G and len(gate_biases) == G
    H = gate_weights[0].shape[0]
    GH = G * H
    assert gate_weights[0].shape == (H, C, k)

    # Fuse gate conv params into one im2col weight matrix: rows ordered
    # (tap j, channel c) to match the in-kernel concat order -> (k*C, G*H).
    w_fused = jnp.concatenate(
        [jnp.transpose(w.astype(jnp.float32), (2, 1, 0)) for w in gate_weights],
        axis=-1).reshape(k * C, GH).astype(conv_dtype)
    b_fused = jnp.concatenate(
        [b.astype(jnp.float32) for b in gate_biases], axis=-1).reshape(1, GH)

    conv_bytes = jnp.dtype(conv_dtype).itemsize
    out_bytes = jnp.dtype(out_dtype).itemsize

    # ---- Footprint-aware tile selection (v7x has only 64 MiB VMEM per TC). ----
    Tt = _choose_time_block(T, time_block)
    cap = _vmem_capacity_bytes()
    budget = int(0.55 * cap)

    def fp(bb, tt):
        return _step_vmem_bytes(bb, tt, C, H, GH, k, conv_bytes, out_bytes)

    Bb = max(1, min(batch_block, B))
    while Bb > 1 and fp(Bb, Tt) > budget:
        Bb //= 2
    while Tt > 8 and Tt % 16 == 0 and fp(Bb, Tt) > budget:
        Tt //= 2
    nT = T // Tt
    # Keep >= 2 grid programs when the MXU stays fed, so both v7x TCs get work.
    if (-(-B // Bb)) * nT < 2 and Bb > 1 and (Bb // 2) * Tt >= 256:
        Bb //= 2

    # Pad batch up to a multiple of Bb instead of collapsing Bb to 1.
    Bpad = -(-B // Bb) * Bb
    x_in = x.astype(conv_dtype)
    if Bpad != B:
        x_in = jnp.pad(x_in, ((0, Bpad - B), (0, 0), (0, 0)))
    nB = Bpad // Bb
    M = Bb * Tt

    # Lane-dense output layout for H < 128 (free row-major view back to (B,T,H)).
    flat_out = ((H % 128 != 0)
                and ((Tt * H) % 128 == 0 or nT == 1)
                and (Bb % 8 == 0 or Bb == Bpad))
    if flat_out:
        out_shape = jax.ShapeDtypeStruct((Bpad, T * H), out_dtype)
        out_spec = pl.BlockSpec((Bb, Tt * H), lambda b, t: (b, t))
    else:
        out_shape = jax.ShapeDtypeStruct((Bpad, T, H), out_dtype)
        out_spec = pl.BlockSpec((Bb, Tt, H), lambda b, t: (b, t, 0))

    use_xlu_roll = (Tt > 1) and (M % 8 == 0) and _xlu_roll_ok()

    kern = functools.partial(
        _qrnn_kernel, mode=mode, k=k, Tt=Tt, H=H, Bb=Bb,
        use_xlu_roll=use_xlu_roll, flat_out=flat_out)

    grid_spec = pltpu.PrefetchScalarGridSpec(
        num_scalar_prefetch=0,
        grid=(nB, nT),
        in_specs=[
            pl.BlockSpec((Bb, Tt, C), lambda b, t: (b, t, 0)),
            pl.BlockSpec((k * C, GH), lambda b, t: (0, 0)),   # resident weights
            pl.BlockSpec((1, GH), lambda b, t: (0, 0)),       # resident bias
        ],
        out_specs=out_spec,
        scratch_shapes=[
            pltpu.VMEM((Bb, max(k - 1, 1), C), conv_dtype),   # conv left-context
            pltpu.VMEM((Bb, H), jnp.float32),                 # recurrence carry
        ],
    )

    vmem_limit = min(
        max(int(1.5 * fp(Bb, Tt)), 32 * 1024 * 1024),
        int(0.9 * cap))

    out = pl.pallas_call(
        kern,
        out_shape=out_shape,
        grid_spec=grid_spec,
        compiler_params=pltpu.CompilerParams(
            dimension_semantics=("parallel", "arbitrary"),
            vmem_limit_bytes=vmem_limit),
    )(x_in, w_fused, b_fused)

    if flat_out:
        out = out.reshape(Bpad, T, H)
    return out[:B]


# ----------------------------------------------------------------------------
# Pure-JAX reference (mirror of the PyTorch log-space forward, float32).
# ----------------------------------------------------------------------------
def qrnn_reference(x, gate_weights, gate_biases, *, kernel_size, mode="f"):
    B, T, C = x.shape
    k = kernel_size
    H = gate_weights[0].shape[0]
    xp = jnp.pad(x, ((0, 0), (k - 1, 0), (0, 0)))
    xu = jnp.stack([xp[:, j:j + T, :] for j in range(k)], axis=2)   # (B, T, k, C)

    def conv(g):
        return (jnp.einsum("btjc,hcj->bth", xu, gate_weights[g].astype(jnp.float32))
                + gate_biases[g].astype(jnp.float32)[None, None, :])

    raw_z, raw_f = conv(0), conv(1)
    log_z = jax.nn.log_sigmoid(raw_z)
    log_f = jax.nn.log_sigmoid(raw_f)
    if mode == "ifo":
        log_1mf = jax.nn.log_sigmoid(conv(3))
    else:
        log_1mf = jax.nn.log_sigmoid(-raw_f)

    rg = log_f[:, 1:, :]
    cs = jnp.cumsum(rg, axis=1)
    rg = rg - cs + cs[:, -1:, :]
    rg = jnp.concatenate([rg, jnp.zeros((B, 1, H), jnp.float32)], axis=1)
    log_hidden = jax.lax.cumlogsumexp(log_z + log_1mf + rg, axis=1)
    hidden = jnp.exp(log_hidden - rg)
    if mode in ("fo", "ifo"):
        hidden = hidden * jax.nn.sigmoid(conv(2))
    return hidden


if __name__ == "__main__":
    master = jax.random.PRNGKey(0)

    def make_params(key, C, H, ksz, G):
        keys = jax.random.split(key, 2 * G)
        scale = 1.0 / jnp.sqrt(jnp.float32(C * ksz))
        ws = [scale * jax.random.normal(keys[2 * g], (H, C, ksz), dtype=jnp.float32)
              for g in range(G)]
        bs = [0.1 * jax.random.normal(keys[2 * g + 1], (H,), dtype=jnp.float32)
              for g in range(G)]
        return ws, bs

    # --- Config 1: module defaults (mode='f'); single T chunk, flat lane-dense
    #     output path (H < 128). ---
    B, T, C, H, ksz, mode = 2, 8, 16, 32, 3, "f"
    key_x1, key_p1, key_x2, key_p2 = jax.random.split(master, 4)
    x1 = jax.random.normal(key_x1, (B, T, C), dtype=jnp.float32)
    ws1, bs1 = make_params(key_p1, C, H, ksz, 2)
    ref1 = qrnn_reference(x1, ws1, bs1, kernel_size=ksz, mode=mode)

    out_f32 = jax.block_until_ready(
        qrnn_forward(x1, ws1, bs1, kernel_size=ksz, mode=mode,
                     conv_dtype=jnp.float32))
    assert out_f32.shape == (B, T, H)
    err = float(jnp.max(jnp.abs(out_f32 - ref1)))
    assert err < 1e-4, f"f32 mismatch vs reference: {err}"

    out_bf16 = jax.block_until_ready(
        qrnn_forward(x1, ws1, bs1, kernel_size=ksz, mode=mode,
                     conv_dtype=jnp.bfloat16))
    err = float(jnp.max(jnp.abs(out_bf16 - ref1)))
    assert err < 1e-1, f"bf16 mismatch vs reference: {err}"

    # --- Config 2: exercises time chunking (recurrence + conv-context carries),
    #     batch padding (B=3 with Bb=2), and the output gate (mode='fo'). ---
    B2, T2, C2, H2, ksz2, mode2 = 3, 32, 16, 32, 3, "fo"
    x2 = jax.random.normal(key_x2, (B2, T2, C2), dtype=jnp.float32)
    ws2, bs2 = make_params(key_p2, C2, H2, ksz2, 3)
    ref2 = qrnn_reference(x2, ws2, bs2, kernel_size=ksz2, mode=mode2)

    out2 = jax.block_until_ready(
        qrnn_forward(x2, ws2, bs2, kernel_size=ksz2, mode=mode2,
                     conv_dtype=jnp.float32, batch_block=2, time_block=16))
    assert out2.shape == (B2, T2, H2)
    err2 = float(jnp.max(jnp.abs(out2 - ref2)))
    assert err2 < 1e-4, f"chunked f32 mismatch vs reference: {err2}"

    print("KERNEL_OK")
</pallas_src>

<mosaic_0001>
module attributes {stable_mosaic.version = 11 : i64} {
  func.func @_k(%arg0: memref<16x32xf32, #tpu.memory_space<vmem>>, %arg1: memref<16x32xf32, #tpu.memory_space<vmem>>) attributes {dimension_semantics = [], scalar_prefetch = 0 : i64, scratch_operands = 0 : i64, tpu.core_type = #tpu.core_type<tc>} {
    %c0 = arith.constant 0 : index
    %c0_0 = arith.constant 0 : index
    %0 = vector.load %arg0[%c0, %c0_0] : memref<16x32xf32, #tpu.memory_space<vmem>>, vector<16x32xf32>
    %c5_i32 = arith.constant 5 : i32
    %1 = tpu.dynamic_rotate %0 by %c5_i32 dim 0 : vector<16x32xf32>, i32 -> vector<16x32xf32>
    %c0_1 = arith.constant 0 : index
    %c0_2 = arith.constant 0 : index
    %2 = vector.load %arg1[%c0_1, %c0_2] : memref<16x32xf32, #tpu.memory_space<vmem>>, vector<16x32xf32>
    tpu.vector_store %arg1[%c0_1, %c0_2], %1 {strides = array<i32>} : memref<16x32xf32, #tpu.memory_space<vmem>>, vector<16x32xf32>,
    return
  }
}

module attributes {stable_mosaic.version = 11 : i64} {
  func.func @_qrnn_kernel(%arg0: i32, %arg1: i32, %arg2: memref<2x8x16xf32, #tpu.memory_space<vmem>>, %arg3: memref<48x64xf32, #tpu.memory_space<vmem>>, %arg4: memref<1x64xf32, #tpu.memory_space<vmem>>, %arg5: memref<2x256xf32, #tpu.memory_space<vmem>>, %arg6: memref<2x2x16xf32, #tpu.memory_space<vmem>>, %arg7: memref<2x32xf32, #tpu.memory_space<vmem>>) attributes {dimension_semantics = [#tpu.dimension_semantics<parallel>, #tpu.dimension_semantics<arbitrary>], iteration_bounds = array<i64: 1, 1>, scalar_prefetch = 0 : i64, scratch_operands = 2 : i64, tpu.core_type = #tpu.core_type<tc>, window_params = [{transform_indices = @transform_0, window_bounds = array<i64: 2, 8, 16>}, {pipeline_mode = #tpu.pipeline_mode<synchronous>, transform_indices = @transform_1, window_bounds = array<i64: 48, 64>}, {pipeline_mode = #tpu.pipeline_mode<synchronous>, transform_indices = @transform_2, window_bounds = array<i64: 1, 64>}, {transform_indices = @transform_3, window_bounds = array<i64: 2, 256>}]} {
    %c0_i32 = arith.constant 0 : i32
    %0 = arith.cmpi eq, %arg1, %c0_i32 : i32
    %1 = arith.extui %0 : i1 to i32
    %c0_i32_0 = arith.constant 0 : i32
    %2 = arith.cmpi ne, %1, %c0_i32_0 : i32
    scf.if %2 {
      %cst_37 = arith.constant 0.000000e+00 : f32
      %123 = vector.broadcast %cst_37 : f32 to vector<2x2x16xf32>
      %c0_38 = arith.constant 0 : index
      %c0_39 = arith.constant 0 : index
      %c0_40 = arith.constant 0 : index
      %124 = vector.load %arg6[%c0_38, %c0_39, %c0_40] : memref<2x2x16xf32, #tpu.memory_space<vmem>>, vector<2x2x16xf32>
      tpu.vector_store %arg6[%c0_38, %c0_39, %c0_40], %123 {strides = array<i32>} : memref<2x2x16xf32, #tpu.memory_space<vmem>>, vector<2x2x16xf32>,
      %cst_41 = arith.constant 0.000000e+00 : f32
      %125 = vector.broadcast %cst_41 : f32 to vector<2x32xf32>
      %c0_42 = arith.constant 0 : index
      %c0_43 = arith.constant 0 : index
      %126 = vector.load %arg7[%c0_42, %c0_43] : memref<2x32xf32, #tpu.memory_space<vmem>>, vector<2x32xf32>
      tpu.vector_store %arg7[%c0_42, %c0_43], %125 {strides = array<i32>} : memref<2x32xf32, #tpu.memory_space<vmem>>, vector<2x32xf32>,
    } else {
    }
    %c0 = arith.constant 0 : index
    %c0_1 = arith.constant 0 : index
    %c0_2 = arith.constant 0 : index
    %3 = vector.load %arg2[%c0, %c0_1, %c0_2] : memref<2x8x16xf32, #tpu.memory_space<vmem>>, vector<2x8x16xf32>
    %c0_3 = arith.constant 0 : index
    %c0_4 = arith.constant 0 : index
    %c0_5 = arith.constant 0 : index
    %4 = vector.load %arg6[%c0_3, %c0_4, %c0_5] : memref<2x2x16xf32, #tpu.memory_space<vmem>>, vector<2x2x16xf32>
    %5 = tpu.concatenate %4, %3 in 1 : vector<2x2x16xf32>, vector<2x8x16xf32> -> vector<2x10x16xf32>
    %6 = vector.extract_strided_slice %5 {offsets = [0, 8, 0], sizes = [2, 2, 16], strides = [1, 1, 1]} : vector<2x10x16xf32> to vector<2x2x16xf32>
    %c0_6 = arith.constant 0 : index
    %c0_7 = arith.constant 0 : index
    %c0_8 = arith.constant 0 : index
    %7 = vector.load %arg6[%c0_6, %c0_7, %c0_8] : memref<2x2x16xf32, #tpu.memory_space<vmem>>, vector<2x2x16xf32>
    tpu.vector_store %arg6[%c0_6, %c0_7, %c0_8], %6 {strides = array<i32>} : memref<2x2x16xf32, #tpu.memory_space<vmem>>, vector<2x2x16xf32>,
    %8 = vector.extract_strided_slice %5 {offsets = [0, 0, 0], sizes = [2, 8, 16], strides = [1, 1, 1]} : vector<2x10x16xf32> to vector<2x8x16xf32>
    %9 = vector.extract_strided_slice %5 {offsets = [0, 1, 0], sizes = [2, 8, 16], strides = [1, 1, 1]} : vector<2x10x16xf32> to vector<2x8x16xf32>
    %10 = vector.extract_strided_slice %5 {offsets = [0, 2, 0], sizes = [2, 8, 16], strides = [1, 1, 1]} : vector<2x10x16xf32> to vector<2x8x16xf32>
    %11 = tpu.concatenate %8, %9, %10 in 2 : vector<2x8x16xf32>, vector<2x8x16xf32>, vector<2x8x16xf32> -> vector<2x8x48xf32>
    %12 = vector.shape_cast %11 : vector<2x8x48xf32> to vector<16x48xf32>
    %c0_9 = arith.constant 0 : index
    %c0_10 = arith.constant 0 : index
    %13 = vector.load %arg3[%c0_9, %c0_10] : memref<48x64xf32, #tpu.memory_space<vmem>>, vector<48x64xf32>
    %cst = arith.constant dense<0.000000e+00> : vector<16x64xf32>
    %14 = tpu.matmul %12, %13, %cst {dimension_numbers = #tpu.dot_dimension_numbers<[1], [0], [0], [1], [0, 0, 1, 1], [], []>} : vector<16x48xf32>, vector<48x64xf32>, vector<16x64xf32> -> vector<16x64xf32>
    %c0_11 = arith.constant 0 : index
    %c0_12 = arith.constant 0 : index
    %15 = vector.load %arg4[%c0_11, %c0_12] : memref<1x64xf32, #tpu.memory_space<vmem>>, vector<1x64xf32>
    %16 = vector.broadcast %15 : vector<1x64xf32> to vector<16x64xf32>
    %17 = arith.addf %14, %16 : vector<16x64xf32>
    %18 = vector.extract_strided_slice %17 {offsets = [0, 0], sizes = [16, 32], strides = [1, 1]} : vector<16x64xf32> to vector<16x32xf32>
    %cst_13 = arith.constant 5.000000e-01 : f32
    %19 = vector.broadcast %cst_13 : f32 to vector<16x32xf32>
    %20 = arith.mulf %19, %18 : vector<16x32xf32>
    %21 = math.tanh %20 : vector<16x32xf32>
    %cst_14 = arith.constant 5.000000e-01 : f32
    %22 = vector.broadcast %cst_14 : f32 to vector<16x32xf32>
    %23 = arith.mulf %22, %21 : vector<16x32xf32>
    %cst_15 = arith.constant 5.000000e-01 : f32
    %24 = vector.broadcast %cst_15 : f32 to vector<16x32xf32>
    %25 = arith.addf %23, %24 : vector<16x32xf32>
    %26 = vector.extract_strided_slice %17 {offsets = [0, 32], sizes = [16, 32], strides = [1, 1]} : vector<16x64xf32> to vector<16x32xf32>
    %cst_16 = arith.constant 5.000000e-01 : f32
    %27 = vector.broadcast %cst_16 : f32 to vector<16x32xf32>
    %28 = arith.mulf %27, %26 : vector<16x32xf32>
    %29 = math.tanh %28 : vector<16x32xf32>
    %cst_17 = arith.constant 5.000000e-01 : f32
    %30 = vector.broadcast %cst_17 : f32 to vector<16x32xf32>
    %31 = arith.mulf %30, %29 : vector<16x32xf32>
    %cst_18 = arith.constant 5.000000e-01 : f32
    %32 = vector.broadcast %cst_18 : f32 to vector<16x32xf32>
    %33 = arith.addf %31, %32 : vector<16x32xf32>
    %cst_19 = arith.constant 1.000000e+00 : f32
    %34 = vector.broadcast %cst_19 : f32 to vector<16x32xf32>
    %35 = arith.subf %34, %33 : vector<16x32xf32>
    %36 = arith.mulf %35, %25 : vector<16x32xf32>
    %37 = tpu.iota {dimensions = array<i32: 0>} : vector<16x1xi32>
    %c8_i32 = arith.constant 8 : i32
    %c0_i32_20 = arith.constant 0 : i32
    %38 = arith.cmpi eq, %c8_i32, %c0_i32_20 : i32
    %c1_i32 = arith.constant 1 : i32
    %39 = arith.select %38, %c1_i32, %c8_i32 : i32
    %40 = vector.broadcast %39 : i32 to vector<16x1xi32>
    %41 = arith.remsi %37, %40 : vector<16x1xi32>
    %c0_i32_21 = arith.constant 0 : i32
    %42 = vector.broadcast %c0_i32_21 : i32 to vector<16x1xi32>
    %43 = arith.cmpi ne, %41, %42 : vector<16x1xi32>
    %c0_i32_22 = arith.constant 0 : i32
    %44 = vector.broadcast %c0_i32_22 : i32 to vector<16x1xi32>
    %45 = arith.cmpi slt, %41, %44 : vector<16x1xi32>
    %c0_i32_23 = arith.constant 0 : i32
    %46 = arith.cmpi slt, %39, %c0_i32_23 : i32
    %47 = vector.broadcast %46 : i1 to vector<16x1xi1>
    %48 = vector.broadcast %47 : vector<16x1xi1> to vector<16x1xi1>
    %49 = arith.xori %45, %48 : vector<16x1xi1>
    %50 = arith.andi %49, %43 : vector<16x1xi1>
    %51 = vector.broadcast %39 : i32 to vector<16x1xi32>
    %52 = arith.addi %41, %51 : vector<16x1xi32>
    %53 = arith.select %50, %52, %41 : vector<16x1xi1>, vector<16x1xi32>
    %54 = vector.extract_strided_slice %33 {offsets = [15, 0], sizes = [1, 32], strides = [1, 1]} : vector<16x32xf32> to vector<1x32xf32>
    %55 = vector.extract_strided_slice %33 {offsets = [0, 0], sizes = [15, 32], strides = [1, 1]} : vector<16x32xf32> to vector<15x32xf32>
    %56 = tpu.concatenate %54, %55 in 0 : vector<1x32xf32>, vector<15x32xf32> -> vector<16x32xf32>
    %57 = vector.extract_strided_slice %36 {offsets = [15, 0], sizes = [1, 32], strides = [1, 1]} : vector<16x32xf32> to vector<1x32xf32>
    %58 = vector.extract_strided_slice %36 {offsets = [0, 0], sizes = [15, 32], strides = [1, 1]} : vector<16x32xf32> to vector<15x32xf32>
    %59 = tpu.concatenate %57, %58 in 0 : vector<1x32xf32>, vector<15x32xf32> -> vector<16x32xf32>
    %c1_i32_24 = arith.constant 1 : i32
    %60 = vector.broadcast %c1_i32_24 : i32 to vector<16x1xi32>
    %61 = arith.cmpi sge, %53, %60 : vector<16x1xi32>
    %cst_25 = arith.constant 0.000000e+00 : f32
    %62 = vector.shape_cast %61 : vector<16x1xi1> to vector<16x1xi1>
    %63 = vector.broadcast %62 : vector<16x1xi1> to vector<16x32xi1>
    %64 = vector.broadcast %cst_25 : f32 to vector<16x32xf32>
    %65 = arith.select %63, %59, %64 : vector<16x32xi1>, vector<16x32xf32>
    %66 = arith.mulf %33, %65 : vector<16x32xf32>
    %67 = arith.addf %66, %36 : vector<16x32xf32>
    %cst_26 = arith.constant 1.000000e+00 : f32
    %68 = vector.shape_cast %61 : vector<16x1xi1> to vector<16x1xi1>
    %69 = vector.broadcast %68 : vector<16x1xi1> to vector<16x32xi1>
    %70 = vector.broadcast %cst_26 : f32 to vector<16x32xf32>
    %71 = arith.select %69, %56, %70 : vector<16x32xi1>, vector<16x32xf32>
    %72 = arith.mulf %33, %71 : vector<16x32xf32>
    %73 = vector.extract_strided_slice %72 {offsets = [14, 0], sizes = [2, 32], strides = [1, 1]} : vector<16x32xf32> to vector<2x32xf32>
    %74 = vector.extract_strided_slice %72 {offsets = [0, 0], sizes = [14, 32], strides = [1, 1]} : vector<16x32xf32> to vector<14x32xf32>
    %75 = tpu.concatenate %73, %74 in 0 : vector<2x32xf32>, vector<14x32xf32> -> vector<16x32xf32>
    %76 = vector.extract_strided_slice %67 {offsets = [14, 0], sizes = [2, 32], strides = [1, 1]} : vector<16x32xf32> to vector<2x32xf32>
    %77 = vector.extract_strided_slice %67 {offsets = [0, 0], sizes = [14, 32], strides = [1, 1]} : vector<16x32xf32> to vector<14x32xf32>
    %78 = tpu.concatenate %76, %77 in 0 : vector<2x32xf32>, vector<14x32xf32> -> vector<16x32xf32>
    %c2_i32 = arith.constant 2 : i32
    %79 = vector.broadcast %c2_i32 : i32 to vector<16x1xi32>
    %80 = arith.cmpi sge, %53, %79 : vector<16x1xi32>
    %cst_27 = arith.constant 0.000000e+00 : f32
    %81 = vector.shape_cast %80 : vector<16x1xi1> to vector<16x1xi1>
    %82 = vector.broadcast %81 : vector<16x1xi1> to vector<16x32xi1>
    %83 = vector.broadcast %cst_27 : f32 to vector<16x32xf32>
    %84 = arith.select %82, %78, %83 : vector<16x32xi1>, vector<16x32xf32>
    %85 = arith.mulf %72, %84 : vector<16x32xf32>
    %86 = arith.addf %85, %67 : vector<16x32xf32>
    %cst_28 = arith.constant 1.000000e+00 : f32
    %87 = vector.shape_cast %80 : vector<16x1xi1> to vector<16x1xi1>
    %88 = vector.broadcast %87 : vector<16x1xi1> to vector<16x32xi1>
    %89 = vector.broadcast %cst_28 : f32 to vector<16x32xf32>
    %90 = arith.select %88, %75, %89 : vector<16x32xi1>, vector<16x32xf32>
    %91 = arith.mulf %72, %90 : vector<16x32xf32>
    %92 = vector.extract_strided_slice %91 {offsets = [12, 0], sizes = [4, 32], strides = [1, 1]} : vector<16x32xf32> to vector<4x32xf32>
    %93 = vector.extract_strided_slice %91 {offsets = [0, 0], sizes = [12, 32], strides = [1, 1]} : vector<16x32xf32> to vector<12x32xf32>
    %94 = tpu.concatenate %92, %93 in 0 : vector<4x32xf32>, vector<12x32xf32> -> vector<16x32xf32>
    %95 = vector.extract_strided_slice %86 {offsets = [12, 0], sizes = [4, 32], strides = [1, 1]} : vector<16x32xf32> to vector<4x32xf32>
    %96 = vector.extract_strided_slice %86 {offsets = [0, 0], sizes = [12, 32], strides = [1, 1]} : vector<16x32xf32> to vector<12x32xf32>
    %97 = tpu.concatenate %95, %96 in 0 : vector<4x32xf32>, vector<12x32xf32> -> vector<16x32xf32>
    %c4_i32 = arith.constant 4 : i32
    %98 = vector.broadcast %c4_i32 : i32 to vector<16x1xi32>
    %99 = arith.cmpi sge, %53, %98 : vector<16x1xi32>
    %cst_29 = arith.constant 0.000000e+00 : f32
    %100 = vector.shape_cast %99 : vector<16x1xi1> to vector<16x1xi1>
    %101 = vector.broadcast %100 : vector<16x1xi1> to vector<16x32xi1>
    %102 = vector.broadcast %cst_29 : f32 to vector<16x32xf32>
    %103 = arith.select %101, %97, %102 : vector<16x32xi1>, vector<16x32xf32>
    %104 = arith.mulf %91, %103 : vector<16x32xf32>
    %105 = arith.addf %104, %86 : vector<16x32xf32>
    %cst_30 = arith.constant 1.000000e+00 : f32
    %106 = vector.shape_cast %99 : vector<16x1xi1> to vector<16x1xi1>
    %107 = vector.broadcast %106 : vector<16x1xi1> to vector<16x32xi1>
    %108 = vector.broadcast %cst_30 : f32 to vector<16x32xf32>
    %109 = arith.select %107, %94, %108 : vector<16x32xi1>, vector<16x32xf32>
    %110 = arith.mulf %91, %109 : vector<16x32xf32>
    %111 = vector.shape_cast %110 : vector<16x32xf32> to vector<2x8x32xf32>
    %112 = vector.shape_cast %105 : vector<16x32xf32> to vector<2x8x32xf32>
    %c0_31 = arith.constant 0 : index
    %c0_32 = arith.constant 0 : index
    %113 = vector.load %arg7[%c0_31, %c0_32] : memref<2x32xf32, #tpu.memory_space<vmem>>, vector<2x32xf32>
    %114 = vector.shape_cast %113 : vector<2x32xf32> to vector<2x1x32xf32>
    %115 = vector.broadcast %114 : vector<2x1x32xf32> to vector<2x8x32xf32>
    %116 = arith.mulf %111, %115 : vector<2x8x32xf32>
    %117 = arith.addf %116, %112 : vector<2x8x32xf32>
    %118 = vector.extract_strided_slice %117 {offsets = [0, 7, 0], sizes = [2, 1, 32], strides = [1, 1, 1]} : vector<2x8x32xf32> to vector<2x1x32xf32>
    %119 = vector.shape_cast %118 : vector<2x1x32xf32> to vector<2x32xf32>
    %c0_33 = arith.constant 0 : index
    %c0_34 = arith.constant 0 : index
    %120 = vector.load %arg7[%c0_33, %c0_34] : memref<2x32xf32, #tpu.memory_space<vmem>>, vector<2x32xf32>
    tpu.vector_store %arg7[%c0_33, %c0_34], %119 {strides = array<i32>} : memref<2x32xf32, #tpu.memory_space<vmem>>, vector<2x32xf32>,
    %121 = vector.shape_cast %117 : vector<2x8x32xf32> to vector<2x256xf32>
    %c0_35 = arith.constant 0 : index
    %c0_36 = arith.constant 0 : index
    %122 = vector.load %arg5[%c0_35, %c0_36] : memref<2x256xf32, #tpu.memory_space<vmem>>, vector<2x256xf32>
    tpu.vector_store %arg5[%c0_35, %c0_36], %121 {strides = array<i32>} : memref<2x256xf32, #tpu.memory_space<vmem>>, vector<2x256xf32>,
    return
  }
  func.func @transform_0(%arg0: i32, %arg1: i32) -> (i32, i32, i32) {
    %c0_i32 = arith.constant 0 : i32
    %c0_i32_0 = arith.constant 0 : i32
    return %arg0, %arg1, %c0_i32 : i32, i32, i32
  }
  func.func @transform_1(%arg0: i32, %arg1: i32) -> (i32, i32) {
    %c0_i32 = arith.constant 0 : i32
    %c0_i32_0 = arith.constant 0 : i32
    %c0_i32_1 = arith.constant 0 : i32
    return %c0_i32, %c0_i32_0 : i32, i32
  }
  func.func @transform_2(%arg0: i32, %arg1: i32) -> (i32, i32) {
    %c0_i32 = arith.constant 0 : i32
    %c0_i32_0 = arith.constant 0 : i32
    %c0_i32_1 = arith.constant 0 : i32
    return %c0_i32, %c0_i32_0 : i32, i32
  }
  func.func @transform_3(%arg0: i32, %arg1: i32) -> (i32, i32) {
    %c0_i32 = arith.constant 0 : i32
    return %arg0, %arg1 : i32, i32
  }
}

</mosaic_0001>

<llo_original>
// kernel: tpu_custom_call.1
$region0: #{tpu_custom_call.1}
  #allocation0 [shape = 'u32[]', space=smem, size = 0x4, offset = 0x4, fixed_abs, tag = 'smem constant byte address 0x4 - core index']
  #allocation1 [shape = 'u32[72,128]{1,0:T(1,128)}', space=vmem, size = 0x9000, scoped, tag = 'internal scratch']
  %s0 = inlined_call_operand.hbm [shape: f32[16,32], index: 0, kind: input, shape index: {}]
  %s1 = inlined_call_operand.hbm [shape: f32[16,32], index: 1, kind: output, shape index: {}]
  %s2 = sld [smem:[#allocation0]]
  $region18: #{tpu_custom_call.1} parent=0
    _
  %s4 = ssub.s32 1, %s2
  %s5 = scalar_select 0, %s4, %s2
  $region1: #{tpu_custom_call.1} parent=0
    #allocation2 [shape = 'u8[8192]{0}', space=vmem, size = 0x2000, scoped, tag = 'input window, operand 0, single buffered']
    #allocation3 [shape = 's32[1]{0}', space=sflag, size = 0x4, scoped, tag = 'scoped memory for tpu_custom_call.1']
    #allocation4 [shape = 's32[1]{0}', space=sflag, size = 0x4, scoped, tag = 'scoped memory for tpu_custom_call.1']
    #allocation5 [shape = 'u8[8192]{0}', space=vmem, size = 0x2000, scoped, tag = 'output window, operand 0, single buffered']
    %6 = vsyncpa [#allocation3], 0
    %7 = vsyncpa [#allocation4], 0
    // Predicated region
    $region2: #{tpu_custom_call.1} parent=1 // pred_check
      _
    $region3: #{tpu_custom_call.1} parent=1 // pred_check_branch
      %9 = sbr.rel (0) target = $region5
    $region4: #{tpu_custom_call.1} parent=1 // pred_region
      %11 = vsyncadd [#allocation3], 0
      %s12 = sshll.u32 %s0, 4
      %s13 = int_to_ptr.hbm [resolvable:$true] %s12
      %s14 = sshll.u32 [#allocation2], 4
      %s15 = int_to_ptr.vmem [resolvable:$true] %s14
      %20 = dma.hbm_to_vmem [thread:$0]  %s13, 256, %s15, [#allocation3], 128, 128, 8
    $region5: #{tpu_custom_call.1} parent=1 // pred_fallthru
      _
    // Predicated region
    $region6: #{tpu_custom_call.1} parent=1 // pred_check
      _
    $region7: #{tpu_custom_call.1} parent=1 // pred_check_branch
      %22 = sbr.rel (0) target = $region9
    $region8: #{tpu_custom_call.1} parent=1 // pred_region
      %24 = dma.done [#allocation3], 256
    $region9: #{tpu_custom_call.1} parent=1 // pred_fallthru
      _
    %v25 = vld [vmem:[#allocation2] sm:$0xff]
    %v26 = vld [vmem:[#allocation2 + $0x8] sm:$0xff]
    %v27 = vrot.slane %v25, 3
    %v28 = vrot.slane %v26, 3
    %v29 = vlaneseq
    %v30 = vshrl.u32 %v29, 7
    %vm31 = vcmp.lt.s32.totalorder %v30, 5
    %v32 = vsel %vm31, %v27, %v28
    %v33 = vsel %vm31, %v28, %v27
    %vm34 = vcmask 261120
    %35 = vst.msk [vmem:[#allocation5] sm:$0xff] %vm34, %v33
    %36 = vst.msk [vmem:[#allocation5 + $0x8] sm:$0xff] %vm34, %v32
    // Predicated region
    $region10: #{tpu_custom_call.1} parent=1 // pred_check
      _
    $region11: #{tpu_custom_call.1} parent=1 // pred_check_branch
      %38 = sbr.rel (0) target = $region13
    $region12: #{tpu_custom_call.1} parent=1 // pred_region
      %40 = vsyncadd [#allocation4], 0
      %s41 = sshll.u32 [#allocation5], 4
      %s42 = int_to_ptr.vmem [resolvable:$true] %s41
      %s43 = sshll.u32 %s1, 4
      %s44 = int_to_ptr.hbm [resolvable:$true] %s43
      %49 = dma.vmem_to_hbm [thread:$0]  %s42, 256, %s44, [#allocation4], 128, 128, 8
    $region13: #{tpu_custom_call.1} parent=1 // pred_fallthru
      _
    // Predicated region
    $region14: #{tpu_custom_call.1} parent=1 // pred_check
      _
    $region15: #{tpu_custom_call.1} parent=1 // pred_check_branch
      %51 = sbr.rel (0) target = $region17
    $region16: #{tpu_custom_call.1} parent=1 // pred_region
      %53 = dma.done [#allocation4], 256
    $region17: #{tpu_custom_call.1} parent=1 // pred_fallthru
      _
    %54 = vsyncpa [#allocation3], 1
    %55 = vsyncpa [#allocation4], 1

// kernel: tpu_custom_call.1
$region0: #{tpu_custom_call.1}
  #allocation0 [shape = 'u32[]', space=smem, size = 0x4, offset = 0x4, fixed_abs, tag = 'smem constant byte address 0x4 - core index']
  #allocation1 [shape = 'u32[72,128]{1,0:T(1,128)}', space=vmem, size = 0x9000, scoped, tag = 'internal scratch']
  #allocation2 [shape = 'f32[2,2,16]{2,1,0:T(2,128)}', space=vmem, size = 0x800, scoped, tag = 'scratch operand']
  #allocation3 [shape = 'f32[2,32]{1,0:T(2,128)}', space=vmem, size = 0x400, scoped, tag = 'scratch operand']
  %s0 = inlined_call_operand.hbm [shape: f32[2,8,16], index: 0, kind: input, shape index: {}]
  %s1 = inlined_call_operand.hbm [shape: f32[48,64], index: 1, kind: input, shape index: {}]
  %s2 = inlined_call_operand.vmem [shape: f32[1,64], index: 2, kind: input, shape index: {}]
  %s3 = inlined_call_operand.hbm [shape: f32[2,256], index: 3, kind: output, shape index: {}]
  %s4 = sld [smem:[#allocation0]]
  $region34: #{tpu_custom_call.1} parent=0
    _
  %s6 = ssub.s32 1, %s4
  %s7 = scalar_select 0, %s6, %s4
  $region1: #{tpu_custom_call.1} parent=0
    #allocation4 [shape = 'u8[8192]{0}', space=vmem, size = 0x2000, scoped, tag = 'input window, operand 0, single buffered']
    #allocation5 [shape = 's32[1]{0}', space=sflag, size = 0x4, scoped, tag = 'scoped memory for tpu_custom_call.1']
    #allocation6 [shape = 's32[1]{0}', space=sflag, size = 0x4, scoped, tag = 'scoped memory for tpu_custom_call.1']
    #allocation7 [shape = 'u8[24576]{0}', space=vmem, size = 0x6000, scoped, tag = 'input window, operand 1, single buffered']
    #allocation8 [shape = 's32[1]{0}', space=sflag, size = 0x4, scoped, tag = 'scoped memory for tpu_custom_call.1']
    #allocation9 [shape = 'u8[2048]{0}', space=vmem, size = 0x800, scoped, tag = 'output window, operand 0, single buffered']
    %8 = vsyncpa [#allocation5], 0
    %9 = vsyncpa [#allocation8], 0
    %10 = vsyncpa [#allocation6], 0
    // Predicated region
    $region2: #{tpu_custom_call.1} parent=1 // pred_check
      _
    $region3: #{tpu_custom_call.1} parent=1 // pred_check_branch
      %12 = sbr.rel (0) target = $region5
    $region4: #{tpu_custom_call.1} parent=1 // pred_region
      %14 = vsyncadd [#allocation5], 0
      %s15 = sshll.u32 %s0, 4
      %s16 = int_to_ptr.hbm [resolvable:$true] %s15
      %s17 = sshll.u32 [#allocation4], 4
      %s18 = int_to_ptr.vmem [resolvable:$true] %s17
      %23 = dma.hbm_to_vmem [thread:$0]  %s16, 256, %s18, [#allocation5], 128, 128, 8
    $region5: #{tpu_custom_call.1} parent=1 // pred_fallthru
      _
    // Predicated region
    $region6: #{tpu_custom_call.1} parent=1 // pred_check
      _
    $region7: #{tpu_custom_call.1} parent=1 // pred_check_branch
      %25 = sbr.rel (0) target = $region9
    $region8: #{tpu_custom_call.1} parent=1 // pred_region
      %27 = vsyncadd [#allocation8], 0
      %s28 = sshll.u32 %s1, 4
      %s29 = int_to_ptr.hbm [resolvable:$true] %s28
      %s30 = sshll.u32 [#allocation7], 4
      %s31 = int_to_ptr.vmem [resolvable:$true] %s30
      %36 = dma.hbm_to_vmem [thread:$0]  %s29, 768, %s31, [#allocation8], 128, 128, 8
    $region9: #{tpu_custom_call.1} parent=1 // pred_fallthru
      _
    // Predicated region
    $region10: #{tpu_custom_call.1} parent=1 // pred_check
      _
    $region11: #{tpu_custom_call.1} parent=1 // pred_check_branch
      %38 = sbr.rel (0) target = $region13
    $region12: #{tpu_custom_call.1} parent=1 // pred_region
      _
    $region13: #{tpu_custom_call.1} parent=1 // pred_fallthru
      _
    // Predicated region
    $region14: #{tpu_custom_call.1} parent=1 // pred_check
      _
    $region15: #{tpu_custom_call.1} parent=1 // pred_check_branch
      %40 = sbr.rel (0) target = $region17
    $region16: #{tpu_custom_call.1} parent=1 // pred_region
      %42 = dma.done [#allocation5], 256
    $region17: #{tpu_custom_call.1} parent=1 // pred_fallthru
      _
    // Predicated region
    $region18: #{tpu_custom_call.1} parent=1 // pred_check
      _
    $region19: #{tpu_custom_call.1} parent=1 // pred_check_branch
      %44 = sbr.rel (0) target = $region21
    $region20: #{tpu_custom_call.1} parent=1 // pred_region
      %46 = dma.done [#allocation8], 768
    $region21: #{tpu_custom_call.1} parent=1 // pred_fallthru
      _
    %p47 = scmp.eq.s32.totalorder 0, 0
    // Predicated region
    $region22: #{tpu_custom_call.1} parent=1 // pred_check
      %p48 = pneg %p47
    $region23: #{tpu_custom_call.1} parent=1 // pred_check_branch
      %50 = sbr.rel (%p48) target = $region25
    $region24: #{tpu_custom_call.1} parent=1 // pred_region
      %vm51 = vcmask 123904
      %52 = vst.msk [vmem:[#allocation2] sm:$0x3] %vm51, 0.0
      %53 = vst.msk [vmem:[#allocation2 + $0x2] sm:$0x3] %vm51, 0.0
      %vm54 = vcmask 254976
      %55 = vst.msk [vmem:[#allocation3] sm:$0x3] %vm54, 0.0
    $region25: #{tpu_custom_call.1} parent=1 // pred_fallthru
      _
    %v56 = vld [vmem:[#allocation4] sm:$0xff]
    %v57 = vld [vmem:[#allocation4 + $0x8] sm:$0xff]
    %v58 = vld [vmem:[#allocation2] sm:$0x3]
    %v59 = vld [vmem:[#allocation2 + $0x2] sm:$0x3]
    %v62 = vrot.slane %v56, 6
    %v63 = vrot.slane %v57, 6
    %vm66 = vcmask 1041408
    %v67 = vsel %vm66, %v58, %v62
    %v68 = vsel %vm66, %v59, %v63
    %vm69 = vcmask 123904
    %70 = vst.msk [vmem:[#allocation2] sm:$0x3] %vm69, %v62
    %71 = vst.msk [vmem:[#allocation2 + $0x2] sm:$0x3] %vm69, %v63
    %vm74 = vcmask 1046528
    %v75 = vrot.slane %v67, 1
    %v76 = vrot.slane %v62, 1
    %v77 = vsel %vm74, %v75, %v76
    %v78 = vrot.slane %v68, 1
    %v79 = vrot.slane %v63, 1
    %v80 = vsel %vm74, %v78, %v79
    %81 = vrot.lane.b32.xlu0 %v77, 16
    %v82 = vpop.permute.xlu0 %81
    %83 = vrot.lane.b32.xlu0 %v80, 16
    %v84 = vpop.permute.xlu0 %83
    %vm87 = vcmask 1045504
    %v88 = vrot.slane %v67, 2
    %v89 = vrot.slane %v62, 2
    %v90 = vsel %vm87, %v88, %v89
    %v91 = vrot.slane %v68, 2
    %v92 = vrot.slane %v63, 2
    %v93 = vsel %vm87, %v91, %v92
    %94 = vrot.lane.b32.xlu0 %v90, 32
    %v95 = vpop.permute.xlu0 %94
    %96 = vrot.lane.b32.xlu0 %v93, 32
    %v97 = vpop.permute.xlu0 %96
    %vm100 = vcmask 130048
    %v101 = vsel %vm100, %v67, %v82
    %v102 = vsel %vm100, %v68, %v84
    %vm103 = vcmask 261120
    %v104 = vsel %vm103, %v101, %v95
    %v105 = vsel %vm103, %v102, %v97
    %v106 = vld [vmem:[#allocation7] sm:$0xff]
    %v107 = vld [vmem:[#allocation7 + $0x8] sm:$0xff]
    %v108 = vld [vmem:[#allocation7 + $0x10] sm:$0xff]
    %v109 = vld [vmem:[#allocation7 + $0x18] sm:$0xff]
    %v110 = vld [vmem:[#allocation7 + $0x20] sm:$0xff]
    %v111 = vld [vmem:[#allocation7 + $0x28] sm:$0xff]
    %v112 = vld [vmem:[%s2] sm:$0x1]
    %v114 = vperm.slane %v112, 0
    %vm116 = vcmask 392192
    %v118 = vsel %vm116, %v104, 0
    %v121 = vsel %vm116, %v105, 0
    %123 = vmatpush.msra.mxu0 0.0
    %124 = vmatpush.msra.mxu0 0.0
    %125 = vmatpush.msra.mxu0 0.0
    %126 = vmatpush.msra.mxu0 0.0
    %127 = vmatpush.msra.mxu0 0.0
    %128 = vmatpush.msra.mxu0 0.0
    %129 = vmatpush.msra.mxu0 0.0
    %130 = vmatpush.msra.mxu0 0.0
    %131 = vmatpush.msra.mxu0 0.0
    %132 = vmatpush.msra.mxu0 0.0
    %133 = vmatpush.msra.mxu0 %v111
    %134 = vmatpush.msra.mxu0 %v110
    %135 = vmatpush.msra.mxu0 %v109
    %136 = vmatpush.msra.mxu0 %v108
    %137 = vmatpush.msra.mxu0 %v107
    %138 = vmatpush.msra.mxu0 %v106
    %139 = vmatmul.f32.gmra.mxu0 %v118
    %v140 = vpop.f32.mrf.mxu0
    %v141 = vadd.f32 %v114, %v140
    %142 = vmatmul.f32.gmra.mxu0 %v121
    %v143 = vpop.f32.mrf.mxu0
    %v144 = vadd.f32 %v114, %v143
    %145 = vdwg.mxu0
    %v146 = vmul.f32 %v141, 0.5
    %v147 = vmul.f32 %v144, 0.5
    %v148 = vtanh.pop %v146
    %v149 = vtanh.pop %v147
    %v150 = vmul.f32 %v148, 0.5
    %v151 = vmul.f32 %v149, 0.5
    %v152 = vadd.f32 %v150, 0.5
    %v153 = vadd.f32 %v151, 0.5
    %v154 = vsub.f32 1.0, %v152
    %v155 = vsub.f32 1.0, %v153
    %158 = vrot.lane.b32.xlu0 %v152, 32
    %v159 = vpop.permute.xlu0 %158
    %160 = vrot.lane.b32.xlu0 %v153, 32
    %v161 = vpop.permute.xlu0 %160
    %v164 = vmul.f32 %v154, %v159
    %v165 = vmul.f32 %v155, %v161
    %v166 = vlaneseq
    %v167 = vshrl.u32 %v166, 7
    %v168 = vadd.s32 %v167, 8
    %vm169 = vcmp.lt.s32.totalorder %v167, 0
    %v170 = vsub.s32 0, %v167
    %v171 = vsel %vm169, %v170, %v167
    %v172 = vshrl.u32 %v171, 3
    %v173 = vand.u32 %v171, 7
    %v174 = vsub.s32 0, %v173
    %v175 = vsel %vm169, %v174, %v173
    %vm176 = vcmp.lt.s32.totalorder %v168, 0
    %v177 = vsub.s32 0, %v168
    %v178 = vsel %vm176, %v177, %v168
    %v179 = vshrl.u32 %v178, 3
    %v180 = vand.u32 %v178, 7
    %v181 = vsub.s32 0, %v180
    %v182 = vsel %vm176, %v181, %v180
    %vm183 = vcmp.ne.s32.totalorder %v175, 0
    %vm184 = vcmp.ne.s32.totalorder %v182, 0
    %vm185 = vcmp.lt.s32.totalorder %v175, 0
    %vm186 = vcmp.lt.s32.totalorder %v182, 0
    %vm187 = vmand %vm185, %vm183
    %vm188 = vmand %vm186, %vm184
    %v189 = vadd.s32 %v175, 8
    %v190 = vadd.s32 %v182, 8
    %v191 = vsel %vm187, %v189, %v175
    %v192 = vsel %vm188, %v190, %v182
    %v193 = vrot.slane %v153, 7
    %vm195 = vcmask 1040384
    %v196 = vrot.slane %v152, 7
    %v197 = vsel %vm195, %v196, %v193
    %v200 = vsel %vm195, %v193, %v196
    %v202 = vrot.slane %v165, 7
    %v205 = vrot.slane %v164, 7
    %v206 = vsel %vm195, %v205, %v202
    %v209 = vsel %vm195, %v202, %v205
    %vm210 = vcmp.ge.s32.totalorder %v191, 1
    %vm211 = vcmp.ge.s32.totalorder %v192, 1
    %v212 = vsel %vm210, 1, 0
    %v213 = vsel %vm211, 1, 0
    %vm214 = vcmp.eq.s32.totalorder %v212, 1
    %vm215 = vcmp.eq.s32.totalorder %v213, 1
    %v216 = vsel %vm214, %v209, 0.0
    %v217 = vsel %vm215, %v206, 0.0
    %v218 = vmul.f32 %v152, %v216
    %v219 = vmul.f32 %v153, %v217
    %v220 = vadd.f32 %v218, %v164
    %v221 = vadd.f32 %v219, %v165
    %v222 = vsel %vm214, %v200, 1.0
    %v223 = vsel %vm215, %v197, 1.0
    %v224 = vmul.f32 %v152, %v222
    %v225 = vmul.f32 %v153, %v223
    %v227 = vrot.slane %v225, 6
    %v230 = vrot.slane %v224, 6
    %v231 = vsel %vm66, %v230, %v227
    %v234 = vsel %vm66, %v227, %v230
    %v236 = vrot.slane %v221, 6
    %v239 = vrot.slane %v220, 6
    %v240 = vsel %vm66, %v239, %v236
    %v243 = vsel %vm66, %v236, %v239
    %vm244 = vcmp.ge.s32.totalorder %v191, 2
    %vm245 = vcmp.ge.s32.totalorder %v192, 2
    %v246 = vsel %vm244, 1, 0
    %v247 = vsel %vm245, 1, 0
    %vm248 = vcmp.eq.s32.totalorder %v246, 1
    %vm249 = vcmp.eq.s32.totalorder %v247, 1
    %v250 = vsel %vm248, %v243, 0.0
    %v251 = vsel %vm249, %v240, 0.0
    %v252 = vmul.f32 %v224, %v250
    %v253 = vmul.f32 %v225, %v251
    %v254 = vadd.f32 %v252, %v220
    %v255 = vadd.f32 %v253, %v221
    %v256 = vsel %vm248, %v234, 1.0
    %v257 = vsel %vm249, %v231, 1.0
    %v258 = vmul.f32 %v224, %v256
    %v259 = vmul.f32 %v225, %v257
    %v261 = vrot.slane %v259, 4
    %vm264 = vcmask 1043456
    %v265 = vrot.slane %v258, 4
    %v266 = vsel %vm264, %v265, %v261
    %v269 = vsel %vm264, %v261, %v265
    %v271 = vrot.slane %v255, 4
    %v274 = vrot.slane %v254, 4
    %v275 = vsel %vm264, %v274, %v271
    %v278 = vsel %vm264, %v271, %v274
    %vm279 = vcmp.ge.s32.totalorder %v191, 4
    %vm280 = vcmp.ge.s32.totalorder %v192, 4
    %v281 = vsel %vm279, 1, 0
    %v282 = vsel %vm280, 1, 0
    %vm283 = vcmp.eq.s32.totalorder %v281, 1
    %vm284 = vcmp.eq.s32.totalorder %v282, 1
    %v285 = vsel %vm283, %v278, 0.0
    %v286 = vsel %vm284, %v275, 0.0
    %v287 = vmul.f32 %v258, %v285
    %v288 = vmul.f32 %v259, %v286
    %v289 = vadd.f32 %v287, %v254
    %v290 = vadd.f32 %v288, %v255
    %v291 = vsel %vm283, %v269, 1.0
    %v292 = vsel %vm284, %v266, 1.0
    %v293 = vmul.f32 %v258, %v291
    %v294 = vmul.f32 %v259, %v292
    %v295 = vld [vmem:[#allocation3] sm:$0x3]
    %v297 = vrot.slane %v295, 1
    %v298 = vperm.slane %v295, 0
    %v299 = vperm.slane %v297, 0
    %300 = vrot.lane.b32.xlu0 %v298, 32
    %v301 = vpop.permute.xlu0 %300
    %302 = vrot.lane.b32.xlu0 %v299, 32
    %v303 = vpop.permute.xlu0 %302
    %v306 = vmul.f32 %v293, %v301
    %v307 = vmul.f32 %v294, %v303
    %v308 = vadd.f32 %v306, %v289
    %v309 = vadd.f32 %v307, %v290
    %v312 = vrot.slane %v309, 7
    %313 = vrot.lane.b32.xlu0 %v308, 96
    %v314 = vpop.permute.xlu0 %313
    %315 = vrot.lane.b32.xlu0 %v312, 96
    %v316 = vpop.permute.xlu0 %315
    %vm319 = vcmask 261127
    %320 = vst.msk [vmem:[#allocation3 - $0x7] sm:$0x80] %vm319, %v314
    %vm321 = vcmask 253952
    %322 = vst.msk [vmem:[#allocation3 + $0x1] sm:$0x1] %vm321, %v316
    %323 = vrot.lane.b32.xlu0 %v309, 96
    %v324 = vpop.permute.xlu0 %323
    %v326 = vrot.slane %v314, 4
    %vm327 = vcmask 1047556
    %v328 = vsel %vm327, 0.0, %v326
    %v330 = vunpack.c.l.s4 1983009808
    %v331 = vunpack.c.0.s8 %v330
    %v332 = vperm.slane %v314, %v331
    %v334 = vunpack.c.l.s4 1983009808
    %v335 = vunpack.c.0.s8 %v334
    %v336 = vperm.slane %v328, %v335
    %v337 = vrot.slane %v324, 4
    %v338 = vsel %vm327, 0.0, %v337
    %v340 = vunpack.c.l.s4 1983009808
    %v341 = vunpack.c.0.s8 %v340
    %v342 = vperm.slane %v324, %v341
    %v344 = vunpack.c.l.s4 1983009808
    %v345 = vunpack.c.0.s8 %v344
    %v346 = vperm.slane %v338, %v345
    %v347 = vrot.slane %v342, 4
    %v348 = vsel %vm327, %v347, %v332
    %v349 = vrot.slane %v332, 4
    %v350 = vsel %vm327, %v342, %v349
    %v352 = vunpack.c.l.s4 1934713408
    %v353 = vunpack.c.0.s8 %v352
    %v354 = vperm.slane %v348, %v353
    %v356 = vunpack.c.l.s4 1934713408
    %v357 = vunpack.c.0.s8 %v356
    %v358 = vperm.slane %v350, %v357
    %v359 = vrot.slane %v346, 4
    %v360 = vsel %vm327, %v359, %v336
    %v361 = vrot.slane %v336, 4
    %v362 = vsel %vm327, %v346, %v361
    %v364 = vunpack.c.l.s4 1934713408
    %v365 = vunpack.c.0.s8 %v364
    %v366 = vperm.slane %v360, %v365
    %v368 = vunpack.c.l.s4 1934713408
    %v369 = vunpack.c.0.s8 %v368
    %v370 = vperm.slane %v362, %v369
    %v371 = vrot.slane %v354, 4
    %v372 = vsel %vm327, 0.0, %v371
    %v373 = vrot.slane %v358, 4
    %v374 = vsel %vm327, 0.0, %v373
    %v375 = vrot.slane %v366, 4
    %v376 = vsel %vm327, 0.0, %v375
    %v377 = vrot.slane %v370, 4
    %v378 = vsel %vm327, 0.0, %v377
    %380 = vrot.lane.b32.xlu0 %v372, 32
    %v381 = vpop.permute.xlu0 %380
    %384 = vrot.lane.b32.xlu0 %v358, 64
    %v385 = vpop.permute.xlu0 %384
    %388 = vrot.lane.b32.xlu0 %v374, 96
    %v389 = vpop.permute.xlu0 %388
    %392 = vrot.lane.b32.xlu0 %v376, 32
    %v393 = vpop.permute.xlu0 %392
    %396 = vrot.lane.b32.xlu0 %v370, 64
    %v397 = vpop.permute.xlu0 %396
    %400 = vrot.lane.b32.xlu0 %v378, 96
    %v401 = vpop.permute.xlu0 %400
    %v403 = vsel %vm103, %v354, %v381
    %vm404 = vcmask 523264
    %v405 = vsel %vm404, %v403, %v385
    %vm406 = vcmask 785408
    %v407 = vsel %vm406, %v405, %v389
    %v408 = vsel %vm103, %v366, %v393
    %v409 = vsel %vm404, %v408, %v397
    %v410 = vsel %vm406, %v409, %v401
    %v413 = vrot.slane %v410, 6
    %v414 = vsel %vm66, %v407, %v413
    %416 = vst [vmem:[#allocation9] sm:$0xf] %v414
    // Predicated region
    $region26: #{tpu_custom_call.1} parent=1 // pred_check
      _
    $region27: #{tpu_custom_call.1} parent=1 // pred_check_branch
      %418 = sbr.rel (0) target = $region29
    $region28: #{tpu_custom_call.1} parent=1 // pred_region
      %420 = vsyncadd [#allocation6], 0
      %s422 = sshll.u32 [#allocation9], 4
      %s423 = int_to_ptr.vmem [resolvable:$true] %s422
      %s424 = sshll.u32 %s3, 4
      %s425 = int_to_ptr.hbm [resolvable:$true] %s424
      %427 = dma.vmem_to_hbm [thread:$0]  %s423, 64, %s425, [#allocation6]
    $region29: #{tpu_custom_call.1} parent=1 // pred_fallthru
      _
    // Predicated region
    $region30: #{tpu_custom_call.1} parent=1 // pred_check
      _
    $region31: #{tpu_custom_call.1} parent=1 // pred_check_branch
      %429 = sbr.rel (0) target = $region33
    $region32: #{tpu_custom_call.1} parent=1 // pred_region
      %431 = dma.done [#allocation6], 64
    $region33: #{tpu_custom_call.1} parent=1 // pred_fallthru
      _
    %432 = vsyncpa [#allocation5], 1
    %433 = vsyncpa [#allocation8], 1
    %434 = vsyncpa [#allocation6], 1

</llo_original>
